<compile_context>
chip_gen: v6e
topology: v6e:2x2x1
jax: 0.10.0
libtpu: 0.0.40
codegen_flags: <defaults>
</compile_context>

<pallas_src>
import functools
import math

import jax
import jax.numpy as jnp
from jax.experimental import pallas as pl
from jax.experimental.pallas import tpu as pltpu

# ----------------------------- hyper-parameters ------------------------------
IN_DIM = 2                     # (t, x) PINN input
HIDDEN = 32
LAMBDA_RESIDUAL = 1.0
LAMBDA_REG = 1e-4
ORDER_REGULARIZER = 2          # network.kernel_regularizer -> p in torch.norm
_INV_LN10 = 1.0 / math.log(10.0)
_LANE = 128
_DEFAULT_BLOCK_POINTS = 2048   # f32 live set per step ~ (2*IN_DIM + 6 + 2*HIDDEN)*BN*4 B


def _round_up(x, m):
    return ((x + m - 1) // m) * m


# ------------------------------- Pallas kernel -------------------------------
def fused_loss_kernel(x_ref, tgt_ref, wv_ref, wr_ref,
                      w1t_ref, b1c_ref, w2t_ref, b2c_ref, w3c_ref, b3_ref,
                      out_ref, acc_ref,
                      *, lambda_residual, lambda_reg):
    """Fused MLP forward + masked loss reductions over one point block.

    Streaming (per grid step, lane-dense over points):
      x_ref   : [IN_DIM, BN]   transposed points (bc | ic | collocation | pad)
      tgt_ref : [1, BN]        targets (u_b | u), zero elsewhere
      wv_ref  : [1, BN]        1/n_vars on BC+IC columns, 0 elsewhere
      wr_ref  : [1, BN]        1/n_res on collocation columns, 0 elsewhere
    Resident (constant index_map):
      w1t [HIDDEN, IN_DIM], b1c [HIDDEN, 1], w2t [HIDDEN, HIDDEN],
      b2c [HIDDEN, 1], w3c [HIDDEN, 1], b3 (1,) SMEM scalar
    out_ref : (3,) f32 SMEM -> [loss_v, loss_vars, loss_res]
    acc_ref : (2,) f32 SMEM scratch -> [sum_vars, sum_res] partial sums
    """
    step = pl.program_id(0)

    @pl.when(step == 0)
    def _():
        acc_ref[0] = jnp.float32(0.0)
        acc_ref[1] = jnp.float32(0.0)

    x = x_ref[...]                                    # [IN_DIM, BN]
    w1t = w1t_ref[...]                                # [HIDDEN, IN_DIM]

    # Layer 1 on the VPU: a K=2 contraction is pure MXU pipeline latency, so do
    # it as IN_DIM lane-wide FMAs ([HIDDEN,1] x [1,BN] broadcasts).
    h1 = w1t[:, 0:1] * x[0:1, :] + b1c_ref[...]
    for d in range(1, IN_DIM):
        h1 = h1 + w1t[:, d:d + 1] * x[d:d + 1, :]
    h1 = jnp.tanh(h1)                                 # [HIDDEN, BN]

    # Layer 2 on the MXU (the only real matmul).
    h2 = jnp.tanh(
        jnp.dot(w2t_ref[...], h1, preferred_element_type=jnp.float32) + b2c_ref[...]
    )                                                 # [HIDDEN, BN]

    # Final layer as a sublane (XLU) reduce -> lane-dense [1, BN] prediction.
    pred = jnp.sum(h2 * w3c_ref[...], axis=0, keepdims=True) + b3_ref[0]   # [1, BN]

    # Masked, lane-dense loss reductions; the 1/n scaling lives in the mask rows,
    # padding columns and the "other" point set contribute exactly zero.
    dv = pred - tgt_ref[...]
    acc_ref[0] += jnp.sum(wv_ref[...] * dv * dv)
    acc_ref[1] += jnp.sum(wr_ref[...] * pred * pred)

    @pl.when(step == pl.num_programs(0) - 1)
    def _():
        loss_vars = acc_ref[0]
        loss_res = acc_ref[1]

        # regularization(): sum of 2-norms over 'weight' params (biases excluded),
        # specialized for p = 2 (sqrt(sum(w*w)), transpose-invariant).
        def l2norm(w_ref):
            w = w_ref[...]
            return jnp.sqrt(jnp.sum(w * w))

        loss_reg = l2norm(w1t_ref) + l2norm(w2t_ref) + l2norm(w3c_ref)
        total = loss_vars + lambda_residual * loss_res + lambda_reg * loss_reg
        out_ref[0] = jnp.log(total) * jnp.float32(_INV_LN10)   # log10
        out_ref[1] = loss_vars
        out_ref[2] = loss_res


# ------------------------------- JAX wrappers ---------------------------------
def prepare_batch(x_u_train, u_train, x_b_train, u_b_train, x_f_train,
                  block_points=_DEFAULT_BLOCK_POINTS):
    """Build the lane-dense transposed, masked point batch ONCE.

    Hoist this out of the train step: the per-step loss evaluation is then a
    single pallas_call with no concat/pad/transpose HBM round-trips.
    """
    xs, tgts = [], []
    # Ec.apply_bc then Ec.apply_ic (module order); static-shape gating in Python.
    if x_b_train.shape[0] != 0:
        xs.append(x_b_train)
        tgts.append(u_b_train)
    if x_u_train.shape[0] != 0:
        xs.append(x_u_train)
        tgts.append(u_train)

    n_vars = sum(int(x.shape[0]) for x in xs)
    n_res = int(x_f_train.shape[0])
    if n_vars == 0:
        raise ValueError("CustomLoss needs at least one BC or IC point (n_vars > 0).")
    if n_res == 0:
        raise ValueError("CustomLoss needs at least one collocation point (n_res > 0).")

    n = n_vars + n_res
    bn = _round_up(min(block_points, _round_up(n, _LANE)), _LANE)
    n_pad = _round_up(n, bn)

    x_cat = jnp.concatenate(xs + [x_f_train], axis=0).astype(jnp.float32)   # [n, IN_DIM]
    x_t = jnp.zeros((IN_DIM, n_pad), jnp.float32).at[:, :n].set(x_cat.T)    # [IN_DIM, N]

    tgt_cat = jnp.concatenate([t.reshape(-1) for t in tgts], axis=0).astype(jnp.float32)
    tgt_row = jnp.zeros((1, n_pad), jnp.float32).at[0, :n_vars].set(tgt_cat)

    col = jnp.arange(n_pad)
    vars_w = jnp.where(col < n_vars, 1.0 / n_vars, 0.0).astype(jnp.float32).reshape(1, n_pad)
    res_w = jnp.where((col >= n_vars) & (col < n), 1.0 / n_res, 0.0).astype(
        jnp.float32).reshape(1, n_pad)

    return {"x_t": x_t, "tgt": tgt_row, "vars_w": vars_w, "res_w": res_w,
            "block_points": bn, "n_vars": n_vars, "n_res": n_res}


def custom_loss(params, batch):
    """Pallas equivalent of CustomLoss.forward on a prepared batch.

    Returns (loss_v, loss_vars, loss_res) as f32 scalars.
    """
    w1t, b1c, w2t, b2c, w3c, b3 = params
    x_t, tgt, vars_w, res_w = batch["x_t"], batch["tgt"], batch["vars_w"], batch["res_w"]
    bn = batch["block_points"]
    n_pad = x_t.shape[1]
    n_blocks = n_pad // bn

    kernel = functools.partial(
        fused_loss_kernel,
        lambda_residual=float(LAMBDA_RESIDUAL),
        lambda_reg=float(LAMBDA_REG),
    )

    def point_spec(rows):
        return pl.BlockSpec((rows, bn), lambda i: (0, i))

    def resident(shape):            # weights stay VMEM-resident across the grid
        return pl.BlockSpec(shape, lambda i: (0, 0))

    smem = pl.BlockSpec(memory_space=pltpu.MemorySpace.SMEM)

    cost = pl.CostEstimate(
        flops=int(n_pad * (2 * IN_DIM * HIDDEN + 2 * HIDDEN * HIDDEN + 2 * HIDDEN + 8)),
        transcendentals=int(2 * HIDDEN * n_pad),
        bytes_accessed=int(4 * ((IN_DIM + 3) * n_pad
                                + HIDDEN * (IN_DIM + HIDDEN + 3) + 1 + 3)),
    )

    out = pl.pallas_call(
        kernel,
        grid=(n_blocks,),
        out_shape=jax.ShapeDtypeStruct((3,), jnp.float32),
        in_specs=[
            point_spec(IN_DIM),           # x_t      [IN_DIM, N] streamed
            point_spec(1),                # tgt      [1, N]     streamed
            point_spec(1),                # vars_w   [1, N]     streamed
            point_spec(1),                # res_w    [1, N]     streamed
            resident((HIDDEN, IN_DIM)),   # w1t
            resident((HIDDEN, 1)),        # b1c
            resident((HIDDEN, HIDDEN)),   # w2t
            resident((HIDDEN, 1)),        # b2c
            resident((HIDDEN, 1)),        # w3c
            smem,                         # b3 scalar
        ],
        out_specs=smem,
        scratch_shapes=[pltpu.SMEM((2,), jnp.float32)],
        compiler_params=pltpu.CompilerParams(
            # Resident SMEM accumulator across the point axis => "arbitrary".
            dimension_semantics=("arbitrary",),
        ),
        cost_estimate=cost,
    )(x_t, tgt, vars_w, res_w, w1t, b1c, w2t, b2c, w3c, b3)

    return out[0], out[1], out[2]


def custom_loss_from_points(params, x_u_train, u_train, x_b_train, u_b_train,
                            x_f_train, block_points=_DEFAULT_BLOCK_POINTS):
    """Convenience wrapper matching the original call shape (prep not hoisted)."""
    batch = prepare_batch(x_u_train, u_train, x_b_train, u_b_train, x_f_train,
                          block_points=block_points)
    return custom_loss(params, batch)


def init_params(key):
    """Deterministic synthetic tanh-MLP 2 -> 32 -> 32 -> 1 in the kernel layout:
    w1t [HIDDEN, IN_DIM], b1c [HIDDEN, 1], w2t [HIDDEN, HIDDEN] (= w2.T),
    b2c [HIDDEN, 1], w3c [HIDDEN, 1], b3 (1,).  2-norms are transpose-invariant,
    so the regularizer matches the reference parameterization exactly."""
    k1, k2, k3 = jax.random.split(key, 3)
    w1t = 0.3 * jax.random.normal(k1, (HIDDEN, IN_DIM), jnp.float32)
    b1c = jnp.zeros((HIDDEN, 1), jnp.float32)
    w2t = 0.3 * jax.random.normal(k2, (HIDDEN, HIDDEN), jnp.float32)
    b2c = jnp.zeros((HIDDEN, 1), jnp.float32)
    w3c = 0.3 * jax.random.normal(k3, (HIDDEN, 1), jnp.float32)
    b3 = jnp.zeros((1,), jnp.float32)
    return (w1t, b1c, w2t, b2c, w3c, b3)


def reference_loss(params, x_u, u, x_b, u_b, x_f):
    """Pure-JAX reference of the same forward semantics (for a self-check)."""
    w1t, b1c, w2t, b2c, w3c, b3 = params

    def net(x):
        h1 = jnp.tanh(x @ w1t.T + b1c[:, 0])
        h2 = jnp.tanh(h1 @ w2t.T + b2c[:, 0])
        return h2 @ w3c[:, 0] + b3[0]

    pred_vars = jnp.concatenate([net(x_b), net(x_u)], axis=0)
    tgt = jnp.concatenate([u_b.reshape(-1), u.reshape(-1)], axis=0)
    loss_vars = jnp.mean((pred_vars - tgt) ** 2)
    loss_res = jnp.mean(net(x_f) ** 2)
    loss_reg = (jnp.sqrt(jnp.sum(w1t * w1t)) + jnp.sqrt(jnp.sum(w2t * w2t))
                + jnp.sqrt(jnp.sum(w3c * w3c)))
    loss_v = jnp.log10(loss_vars + LAMBDA_RESIDUAL * loss_res + LAMBDA_REG * loss_reg)
    return loss_v, loss_vars, loss_res


if __name__ == "__main__":
    key = jax.random.PRNGKey(0)
    kp, ku, kub, kb, kbb, kf = jax.random.split(key, 6)

    params = init_params(kp)

    n_u, n_b, n_f = 32, 32, 128
    x_u_train = jax.random.uniform(ku, (n_u, IN_DIM), jnp.float32)
    u_train = jax.random.normal(kub, (n_u, 1), jnp.float32)
    x_b_train = jax.random.uniform(kb, (n_b, IN_DIM), jnp.float32)
    u_b_train = jax.random.normal(kbb, (n_b, 1), jnp.float32)
    x_f_train = jax.random.uniform(kf, (n_f, IN_DIM), jnp.float32)

    # Batch prep hoisted out of the train step; block_points=128 so the
    # 192-point demo exercises the multi-step grid / accumulator path.
    batch = prepare_batch(x_u_train, u_train, x_b_train, u_b_train, x_f_train,
                          block_points=128)

    loss_v, loss_vars, loss_res = custom_loss(params, batch)
    jax.block_until_ready((loss_v, loss_vars, loss_res))

    # Light numerical self-check against the pure-JAX reference.
    ref = reference_loss(params, x_u_train, u_train, x_b_train, u_b_train, x_f_train)
    for got, want in zip((loss_v, loss_vars, loss_res), ref):
        got_f, want_f = float(got), float(want)
        assert abs(got_f - want_f) <= 5e-3 * max(1.0, abs(want_f)), (got_f, want_f)

    print("KERNEL_OK")
</pallas_src>

<mosaic_0001>
module attributes {stable_mosaic.version = 11 : i64} {
  func.func @fused_loss_kernel(%arg0: i32, %arg1: memref<2x128xf32, #tpu.memory_space<vmem>>, %arg2: memref<1x128xf32, #tpu.memory_space<vmem>>, %arg3: memref<1x128xf32, #tpu.memory_space<vmem>>, %arg4: memref<1x128xf32, #tpu.memory_space<vmem>>, %arg5: memref<32x2xf32, #tpu.memory_space<vmem>>, %arg6: memref<32x1xf32, #tpu.memory_space<vmem>>, %arg7: memref<32x32xf32, #tpu.memory_space<vmem>>, %arg8: memref<32x1xf32, #tpu.memory_space<vmem>>, %arg9: memref<32x1xf32, #tpu.memory_space<vmem>>, %arg10: memref<1xf32, #tpu.memory_space<smem>>, %arg11: memref<3xf32, #tpu.memory_space<smem>>, %arg12: memref<2xf32, #tpu.memory_space<smem>>) attributes {dimension_semantics = [#tpu.dimension_semantics<arbitrary>], iteration_bounds = array<i64: 2>, scalar_prefetch = 0 : i64, scratch_operands = 1 : i64, tpu.core_type = #tpu.core_type<tc>, window_params = [{transform_indices = @transform_0, window_bounds = array<i64: 2, 128>}, {transform_indices = @transform_1, window_bounds = array<i64: 1, 128>}, {transform_indices = @transform_2, window_bounds = array<i64: 1, 128>}, {transform_indices = @transform_3, window_bounds = array<i64: 1, 128>}, {pipeline_mode = #tpu.pipeline_mode<synchronous>, transform_indices = @transform_4, window_bounds = array<i64: 32, 2>}, {pipeline_mode = #tpu.pipeline_mode<synchronous>, transform_indices = @transform_5, window_bounds = array<i64: 32, 1>}, {pipeline_mode = #tpu.pipeline_mode<synchronous>, transform_indices = @transform_6, window_bounds = array<i64: 32, 32>}, {pipeline_mode = #tpu.pipeline_mode<synchronous>, transform_indices = @transform_7, window_bounds = array<i64: 32, 1>}, {pipeline_mode = #tpu.pipeline_mode<synchronous>, transform_indices = @transform_8, window_bounds = array<i64: 32, 1>}, {transform_indices = @transform_9, window_bounds = array<i64: 1>}, {transform_indices = @transform_10, window_bounds = array<i64: 3>}]} {
    %c0_i32 = arith.constant 0 : i32
    %0 = arith.cmpi eq, %arg0, %c0_i32 : i32
    %1 = arith.extui %0 : i1 to i32
    %c0_i32_0 = arith.constant 0 : i32
    %2 = arith.cmpi ne, %1, %c0_i32_0 : i32
    scf.if %2 {
      %cst_26 = arith.constant 0.000000e+00 : f32
      %c0_27 = arith.constant 0 : index
      %59 = memref.load %arg12[%c0_27] : memref<2xf32, #tpu.memory_space<smem>>
      memref.store %cst_26, %arg12[%c0_27] : memref<2xf32, #tpu.memory_space<smem>>
      %cst_28 = arith.constant 0.000000e+00 : f32
      %c1_29 = arith.constant 1 : index
      %60 = memref.load %arg12[%c1_29] : memref<2xf32, #tpu.memory_space<smem>>
      memref.store %cst_28, %arg12[%c1_29] : memref<2xf32, #tpu.memory_space<smem>>
    } else {
    }
    %c0 = arith.constant 0 : index
    %c0_1 = arith.constant 0 : index
    %3 = vector.load %arg1[%c0, %c0_1] : memref<2x128xf32, #tpu.memory_space<vmem>>, vector<2x128xf32>
    %c0_2 = arith.constant 0 : index
    %c0_3 = arith.constant 0 : index
    %4 = vector.load %arg5[%c0_2, %c0_3] : memref<32x2xf32, #tpu.memory_space<vmem>>, vector<32x2xf32>
    %5 = vector.extract_strided_slice %4 {offsets = [0, 0], sizes = [32, 1], strides = [1, 1]} : vector<32x2xf32> to vector<32x1xf32>
    %6 = vector.extract_strided_slice %3 {offsets = [0, 0], sizes = [1, 128], strides = [1, 1]} : vector<2x128xf32> to vector<1x128xf32>
    %7 = vector.broadcast %5 : vector<32x1xf32> to vector<32x128xf32>
    %8 = vector.broadcast %6 : vector<1x128xf32> to vector<32x128xf32>
    %9 = arith.mulf %7, %8 : vector<32x128xf32>
    %c0_4 = arith.constant 0 : index
    %c0_5 = arith.constant 0 : index
    %10 = vector.load %arg6[%c0_4, %c0_5] : memref<32x1xf32, #tpu.memory_space<vmem>>, vector<32x1xf32>
    %11 = vector.broadcast %10 : vector<32x1xf32> to vector<32x128xf32>
    %12 = arith.addf %9, %11 : vector<32x128xf32>
    %13 = vector.extract_strided_slice %4 {offsets = [0, 1], sizes = [32, 1], strides = [1, 1]} : vector<32x2xf32> to vector<32x1xf32>
    %14 = vector.extract_strided_slice %3 {offsets = [1, 0], sizes = [1, 128], strides = [1, 1]} : vector<2x128xf32> to vector<1x128xf32>
    %15 = vector.broadcast %13 : vector<32x1xf32> to vector<32x128xf32>
    %16 = vector.broadcast %14 : vector<1x128xf32> to vector<32x128xf32>
    %17 = arith.mulf %15, %16 : vector<32x128xf32>
    %18 = arith.addf %12, %17 : vector<32x128xf32>
    %19 = math.tanh %18 : vector<32x128xf32>
    %c0_6 = arith.constant 0 : index
    %c0_7 = arith.constant 0 : index
    %20 = vector.load %arg7[%c0_6, %c0_7] : memref<32x32xf32, #tpu.memory_space<vmem>>, vector<32x32xf32>
    %cst = arith.constant dense<0.000000e+00> : vector<32x128xf32>
    %21 = tpu.matmul %20, %19, %cst {dimension_numbers = #tpu.dot_dimension_numbers<[1], [0], [0], [1], [0, 0, 1, 1], [], []>} : vector<32x32xf32>, vector<32x128xf32>, vector<32x128xf32> -> vector<32x128xf32>
    %c0_8 = arith.constant 0 : index
    %c0_9 = arith.constant 0 : index
    %22 = vector.load %arg8[%c0_8, %c0_9] : memref<32x1xf32, #tpu.memory_space<vmem>>, vector<32x1xf32>
    %23 = vector.broadcast %22 : vector<32x1xf32> to vector<32x128xf32>
    %24 = arith.addf %21, %23 : vector<32x128xf32>
    %25 = math.tanh %24 : vector<32x128xf32>
    %c0_10 = arith.constant 0 : index
    %c0_11 = arith.constant 0 : index
    %26 = vector.load %arg9[%c0_10, %c0_11] : memref<32x1xf32, #tpu.memory_space<vmem>>, vector<32x1xf32>
    %27 = vector.broadcast %26 : vector<32x1xf32> to vector<32x128xf32>
    %28 = arith.mulf %25, %27 : vector<32x128xf32>
    %cst_12 = arith.constant dense<0.000000e+00> : vector<128xf32>
    %29 = vector.multi_reduction <add>, %28, %cst_12 [0] : vector<32x128xf32> to vector<128xf32>
    %30 = vector.shape_cast %29 : vector<128xf32> to vector<1x128xf32>
    %c0_13 = arith.constant 0 : index
    %31 = memref.load %arg10[%c0_13] : memref<1xf32, #tpu.memory_space<smem>>
    %32 = vector.broadcast %31 : f32 to vector<1x128xf32>
    %33 = arith.addf %30, %32 : vector<1x128xf32>
    %c0_14 = arith.constant 0 : index
    %c0_15 = arith.constant 0 : index
    %34 = vector.load %arg2[%c0_14, %c0_15] : memref<1x128xf32, #tpu.memory_space<vmem>>, vector<1x128xf32>
    %35 = arith.subf %33, %34 : vector<1x128xf32>
    %c0_16 = arith.constant 0 : index
    %36 = memref.load %arg12[%c0_16] : memref<2xf32, #tpu.memory_space<smem>>
    %c0_17 = arith.constant 0 : index
    %c0_18 = arith.constant 0 : index
    %37 = vector.load %arg3[%c0_17, %c0_18] : memref<1x128xf32, #tpu.memory_space<vmem>>, vector<1x128xf32>
    %38 = arith.mulf %37, %35 : vector<1x128xf32>
    %39 = arith.mulf %38, %35 : vector<1x128xf32>
    %40 = vector.shape_cast %39 : vector<1x128xf32> to vector<1x1x128xf32>
    %cst_19 = arith.constant dense<0.000000e+00> : vector<1xf32>
    %41 = vector.multi_reduction <add>, %40, %cst_19 [1, 2] : vector<1x1x128xf32> to vector<1xf32>
    %42 = vector.shape_cast %41 : vector<1xf32> to vector<1x1x1xf32>
    %43 = vector.extract %42[0, 0, 0] : f32 from vector<1x1x1xf32>
    %44 = arith.addf %36, %43 : f32
    %c0_20 = arith.constant 0 : index
    %45 = memref.load %arg12[%c0_20] : memref<2xf32, #tpu.memory_space<smem>>
    memref.store %44, %arg12[%c0_20] : memref<2xf32, #tpu.memory_space<smem>>
    %c1 = arith.constant 1 : index
    %46 = memref.load %arg12[%c1] : memref<2xf32, #tpu.memory_space<smem>>
    %c0_21 = arith.constant 0 : index
    %c0_22 = arith.constant 0 : index
    %47 = vector.load %arg4[%c0_21, %c0_22] : memref<1x128xf32, #tpu.memory_space<vmem>>, vector<1x128xf32>
    %48 = arith.mulf %47, %33 : vector<1x128xf32>
    %49 = arith.mulf %48, %33 : vector<1x128xf32>
    %50 = vector.shape_cast %49 : vector<1x128xf32> to vector<1x1x128xf32>
    %cst_23 = arith.constant dense<0.000000e+00> : vector<1xf32>
    %51 = vector.multi_reduction <add>, %50, %cst_23 [1, 2] : vector<1x1x128xf32> to vector<1xf32>
    %52 = vector.shape_cast %51 : vector<1xf32> to vector<1x1x1xf32>
    %53 = vector.extract %52[0, 0, 0] : f32 from vector<1x1x1xf32>
    %54 = arith.addf %46, %53 : f32
    %c1_24 = arith.constant 1 : index
    %55 = memref.load %arg12[%c1_24] : memref<2xf32, #tpu.memory_space<smem>>
    memref.store %54, %arg12[%c1_24] : memref<2xf32, #tpu.memory_space<smem>>
    %c1_i32 = arith.constant 1 : i32
    %56 = arith.cmpi eq, %arg0, %c1_i32 : i32
    %57 = arith.extui %56 : i1 to i32
    %c0_i32_25 = arith.constant 0 : i32
    %58 = arith.cmpi ne, %57, %c0_i32_25 : i32
    scf.if %58 {
      %c0_26 = arith.constant 0 : index
      %59 = memref.load %arg12[%c0_26] : memref<2xf32, #tpu.memory_space<smem>>
      %c1_27 = arith.constant 1 : index
      %60 = memref.load %arg12[%c1_27] : memref<2xf32, #tpu.memory_space<smem>>
      %c0_28 = arith.constant 0 : index
      %c0_29 = arith.constant 0 : index
      %61 = vector.load %arg5[%c0_28, %c0_29] : memref<32x2xf32, #tpu.memory_space<vmem>>, vector<32x2xf32>
      %62 = arith.mulf %61, %61 : vector<32x2xf32>
      %63 = vector.shape_cast %62 : vector<32x2xf32> to vector<1x32x2xf32>
      %cst_30 = arith.constant dense<0.000000e+00> : vector<1xf32>
      %64 = vector.multi_reduction <add>, %63, %cst_30 [1, 2] : vector<1x32x2xf32> to vector<1xf32>
      %65 = vector.shape_cast %64 : vector<1xf32> to vector<1x1x1xf32>
      %66 = vector.extract %65[0, 0, 0] : f32 from vector<1x1x1xf32>
      %67 = math.sqrt %66 : f32
      %c0_31 = arith.constant 0 : index
      %c0_32 = arith.constant 0 : index
      %68 = vector.load %arg7[%c0_31, %c0_32] : memref<32x32xf32, #tpu.memory_space<vmem>>, vector<32x32xf32>
      %69 = arith.mulf %68, %68 : vector<32x32xf32>
      %70 = vector.shape_cast %69 : vector<32x32xf32> to vector<1x32x32xf32>
      %cst_33 = arith.constant dense<0.000000e+00> : vector<1xf32>
      %71 = vector.multi_reduction <add>, %70, %cst_33 [1, 2] : vector<1x32x32xf32> to vector<1xf32>
      %72 = vector.shape_cast %71 : vector<1xf32> to vector<1x1x1xf32>
      %73 = vector.extract %72[0, 0, 0] : f32 from vector<1x1x1xf32>
      %74 = math.sqrt %73 : f32
      %75 = arith.addf %67, %74 : f32
      %c0_34 = arith.constant 0 : index
      %c0_35 = arith.constant 0 : index
      %76 = vector.load %arg9[%c0_34, %c0_35] : memref<32x1xf32, #tpu.memory_space<vmem>>, vector<32x1xf32>
      %77 = arith.mulf %76, %76 : vector<32x1xf32>
      %78 = vector.shape_cast %77 : vector<32x1xf32> to vector<1x32x1xf32>
      %cst_36 = arith.constant dense<0.000000e+00> : vector<1xf32>
      %79 = vector.multi_reduction <add>, %78, %cst_36 [1, 2] : vector<1x32x1xf32> to vector<1xf32>
      %80 = vector.shape_cast %79 : vector<1xf32> to vector<1x1x1xf32>
      %81 = vector.extract %80[0, 0, 0] : f32 from vector<1x1x1xf32>
      %82 = math.sqrt %81 : f32
      %83 = arith.addf %75, %82 : f32
      %cst_37 = arith.constant 1.000000e+00 : f32
      %84 = arith.mulf %cst_37, %60 : f32
      %85 = arith.addf %59, %84 : f32
      %cst_38 = arith.constant 9.99999974E-5 : f32
      %86 = arith.mulf %cst_38, %83 : f32
      %87 = arith.addf %85, %86 : f32
      %88 = math.log %87 : f32
      %cst_39 = arith.constant 0.434294492 : f32
      %89 = arith.mulf %88, %cst_39 : f32
      %c0_40 = arith.constant 0 : index
      %90 = memref.load %arg11[%c0_40] : memref<3xf32, #tpu.memory_space<smem>>
      memref.store %89, %arg11[%c0_40] : memref<3xf32, #tpu.memory_space<smem>>
      %c1_41 = arith.constant 1 : index
      %91 = memref.load %arg11[%c1_41] : memref<3xf32, #tpu.memory_space<smem>>
      memref.store %59, %arg11[%c1_41] : memref<3xf32, #tpu.memory_space<smem>>
      %c2 = arith.constant 2 : index
      %92 = memref.load %arg11[%c2] : memref<3xf32, #tpu.memory_space<smem>>
      memref.store %60, %arg11[%c2] : memref<3xf32, #tpu.memory_space<smem>>
    } else {
    }
    return
  }
  func.func @transform_0(%arg0: i32) -> (i32, i32) {
    %c0_i32 = arith.constant 0 : i32
    %c0_i32_0 = arith.constant 0 : i32
    return %c0_i32, %arg0 : i32, i32
  }
  func.func @transform_1(%arg0: i32) -> (i32, i32) {
    %c0_i32 = arith.constant 0 : i32
    %c0_i32_0 = arith.constant 0 : i32
    return %c0_i32, %arg0 : i32, i32
  }
  func.func @transform_2(%arg0: i32) -> (i32, i32) {
    %c0_i32 = arith.constant 0 : i32
    %c0_i32_0 = arith.constant 0 : i32
    return %c0_i32, %arg0 : i32, i32
  }
  func.func @transform_3(%arg0: i32) -> (i32, i32) {
    %c0_i32 = arith.constant 0 : i32
    %c0_i32_0 = arith.constant 0 : i32
    return %c0_i32, %arg0 : i32, i32
  }
  func.func @transform_4(%arg0: i32) -> (i32, i32) {
    %c0_i32 = arith.constant 0 : i32
    %c0_i32_0 = arith.constant 0 : i32
    %c0_i32_1 = arith.constant 0 : i32
    return %c0_i32, %c0_i32_0 : i32, i32
  }
  func.func @transform_5(%arg0: i32) -> (i32, i32) {
    %c0_i32 = arith.constant 0 : i32
    %c0_i32_0 = arith.constant 0 : i32
    %c0_i32_1 = arith.constant 0 : i32
    return %c0_i32, %c0_i32_0 : i32, i32
  }
  func.func @transform_6(%arg0: i32) -> (i32, i32) {
    %c0_i32 = arith.constant 0 : i32
    %c0_i32_0 = arith.constant 0 : i32
    %c0_i32_1 = arith.constant 0 : i32
    return %c0_i32, %c0_i32_0 : i32, i32
  }
  func.func @transform_7(%arg0: i32) -> (i32, i32) {
    %c0_i32 = arith.constant 0 : i32
    %c0_i32_0 = arith.constant 0 : i32
    %c0_i32_1 = arith.constant 0 : i32
    return %c0_i32, %c0_i32_0 : i32, i32
  }
  func.func @transform_8(%arg0: i32) -> (i32, i32) {
    %c0_i32 = arith.constant 0 : i32
    %c0_i32_0 = arith.constant 0 : i32
    %c0_i32_1 = arith.constant 0 : i32
    return %c0_i32, %c0_i32_0 : i32, i32
  }
  func.func @transform_9(%arg0: i32) -> i32 {
    %c0_i32 = arith.constant 0 : i32
    %c0_i32_0 = arith.constant 0 : i32
    return %c0_i32 : i32
  }
  func.func @transform_10(%arg0: i32) -> i32 {
    %c0_i32 = arith.constant 0 : i32
    %c0_i32_0 = arith.constant 0 : i32
    return %c0_i32 : i32
  }
}

</mosaic_0001>

<llo_original>
// kernel: tpu_custom_call.1
$region0: #{tpu_custom_call.1}
  #allocation0 [shape = 'u32[]', space=smem, size = 0x4, offset = 0x4, fixed_abs, tag = 'smem constant byte address 0x4 - core index']
  #allocation1 [shape = 'u32[144,128]{1,0:T(1,128)}', space=vmem, size = 0x12000, scoped, tag = 'internal scratch']
  #allocation2 [shape = 'f32[2]{0:T(128)}', space=smem, size = 0x200, scoped, tag = 'scratch operand']
  #allocation3 [shape = 'f32[1]{0:T(128)S(6)}', space=smem, size = 0x200, scoped, tag = 'scoped memory for tpu_custom_call.1']
  %s0 = inlined_call_operand.vmem [shape: f32[2,256], index: 0, kind: input, shape index: {}]
  %s1 = inlined_call_operand.vmem [shape: f32[1,256], index: 1, kind: input, shape index: {}]
  %s2 = inlined_call_operand.vmem [shape: f32[1,256], index: 2, kind: input, shape index: {}]
  %s3 = inlined_call_operand.vmem [shape: f32[1,256], index: 3, kind: input, shape index: {}]
  %s4 = inlined_call_operand.vmem [shape: f32[32,2], index: 4, kind: input, shape index: {}]
  %s5 = inlined_call_operand.vmem [shape: f32[32,1], index: 5, kind: input, shape index: {}]
  %s6 = inlined_call_operand.vmem [shape: f32[32,32], index: 6, kind: input, shape index: {}]
  %s7 = inlined_call_operand.vmem [shape: f32[32,1], index: 7, kind: input, shape index: {}]
  %s8 = inlined_call_operand.vmem [shape: f32[32,1], index: 8, kind: input, shape index: {}]
  %s9 = inlined_call_operand.<no memory space> [shape: f32[1], index: 9, kind: input, shape index: {}]
  %s10 = inlined_call_operand.hbm [shape: f32[3], index: 10, kind: output, shape index: {}]
  %s11 = sld [smem:[#allocation0]]
  $region81: #{tpu_custom_call.1} parent=0
    _
  %s13 = ssub.s32 1, %s11
  %s14 = scalar_select 0, %s13, %s11
  %15 = sst [smem:[#allocation3]] %s9
  $region1: #{tpu_custom_call.1} parent=0
    #allocation4 [shape = 'u8[512]{0}', space=smem, size = 0x200, scoped, tag = 'output window, operand 0, single buffered']
    #allocation5 [shape = 's32[2]{0}', space=sflag, size = 0x8, scoped, tag = 'scoped memory for tpu_custom_call.1']
    %16 = vsyncpa [#allocation5], 0
    loop: start=0, step=1, limit=4
    $region2: #{tpu_custom_call.1} parent=1 // loop_pre_header
      _
    $region3: #{tpu_custom_call.1} parent=1 // loop_header
      %s18 = sphi 0, %s22
      %p19 = scmp.ge.s32.totalorder %s18, 4
      %s28 = sphi 0, %s30
      %s31 = sphi 0, %s28
      %s32 = sphi 0, %s31
      %s48 = sphi 0, %s32
      %s54 = sphi 0, %s56
      %s57 = sphi 0, %s54
      %s58 = sphi 0, %s57
      %s74 = sphi 0, %s58
      %s80 = sphi 0, %s82
      %s83 = sphi 0, %s80
      %s84 = sphi 0, %s83
      %s100 = sphi 0, %s84
      %s106 = sphi 0, %s108
      %s109 = sphi 0, %s106
      %s110 = sphi 0, %s109
      %s126 = sphi 0, %s110
      %s130 = sphi 0, %s130
      %s132 = sphi 0, %s130
      %s133 = sphi 0, %s132
      %s147 = sphi 0, %s133
      %s151 = sphi 0, %s151
      %s153 = sphi 0, %s151
      %s154 = sphi 0, %s153
      %s168 = sphi 0, %s154
      %s172 = sphi 0, %s172
      %s174 = sphi 0, %s172
      %s175 = sphi 0, %s174
      %s189 = sphi 0, %s175
      %s193 = sphi 0, %s193
      %s195 = sphi 0, %s193
      %s196 = sphi 0, %s195
      %s210 = sphi 0, %s196
      %s214 = sphi 0, %s214
      %s216 = sphi 0, %s214
      %s217 = sphi 0, %s216
      %s231 = sphi 0, %s217
      %s235 = sphi 0, %s235
      %s237 = sphi 0, %s235
      %s238 = sphi 0, %s237
      %s252 = sphi 0, %s238
      %s256 = sphi 0, %s256
      %s258 = sphi 0, %s256
      %s259 = sphi 0, %s258
      %s273 = sphi 0, %s259
    $region4: #{tpu_custom_call.1} parent=1 // loop_header_branch
      %21 = sbr.rel (%p19) target = $region8
    $region5: #{tpu_custom_call.1} parent=1 // loop_body
      %s23 = ssub.s32 %s18, 1
      %s24 = ssub.s32 %s18, 2
      %s25 = sadd.s32 %s18, 1
      %s26 = ssub.s32 %s18, %s25
      %p27 = scmp.eq.s32.totalorder %s26, 0
      %s29 = sadd.s32 %s28, 1
      %s30 = scalar_select %p27, %s28, %s29
      %p33 = pneg %p27
      %p34 = scmp.eq.s32.totalorder %s18, 1
      %p35 = por %p33, %p34
      %p36 = scmp.ne.s32.totalorder %s28, %s31
      %p37 = scmp.eq.s32.totalorder %s18, 0
      %p38 = por %p36, %p37
      %p39 = scmp.ne.s32.totalorder %s28, %s31
      %p40 = scmp.eq.s32.totalorder %s23, 1
      %p41 = por %p39, %p40
      %p42 = scmp.ne.s32.totalorder %s31, %s32
      %p43 = scmp.eq.s32.totalorder %s23, 0
      %p44 = por %p42, %p43
      %p45 = scmp.ne.s32.totalorder %s31, %s32
      %p46 = scmp.eq.s32.totalorder %s24, 1
      %p47 = por %p45, %p46
      %p49 = scmp.ne.s32.totalorder %s32, %s48
      %p50 = scmp.eq.s32.totalorder %s24, 0
      %p51 = por %p49, %p50
      %s52 = ssub.s32 %s18, %s25
      %p53 = scmp.eq.s32.totalorder %s52, 0
      %s55 = sadd.s32 %s54, 1
      %s56 = scalar_select %p53, %s54, %s55
      %p59 = pneg %p53
      %p60 = scmp.eq.s32.totalorder %s18, 1
      %p61 = por %p59, %p60
      %p62 = scmp.ne.s32.totalorder %s54, %s57
      %p63 = scmp.eq.s32.totalorder %s18, 0
      %p64 = por %p62, %p63
      %p65 = scmp.ne.s32.totalorder %s54, %s57
      %p66 = scmp.eq.s32.totalorder %s23, 1
      %p67 = por %p65, %p66
      %p68 = scmp.ne.s32.totalorder %s57, %s58
      %p69 = scmp.eq.s32.totalorder %s23, 0
      %p70 = por %p68, %p69
      %p71 = scmp.ne.s32.totalorder %s57, %s58
      %p72 = scmp.eq.s32.totalorder %s24, 1
      %p73 = por %p71, %p72
      %p75 = scmp.ne.s32.totalorder %s58, %s74
      %p76 = scmp.eq.s32.totalorder %s24, 0
      %p77 = por %p75, %p76
      %s78 = ssub.s32 %s18, %s25
      %p79 = scmp.eq.s32.totalorder %s78, 0
      %s81 = sadd.s32 %s80, 1
      %s82 = scalar_select %p79, %s80, %s81
      %p85 = pneg %p79
      %p86 = scmp.eq.s32.totalorder %s18, 1
      %p87 = por %p85, %p86
      %p88 = scmp.ne.s32.totalorder %s80, %s83
      %p89 = scmp.eq.s32.totalorder %s18, 0
      %p90 = por %p88, %p89
      %p91 = scmp.ne.s32.totalorder %s80, %s83
      %p92 = scmp.eq.s32.totalorder %s23, 1
      %p93 = por %p91, %p92
      %p94 = scmp.ne.s32.totalorder %s83, %s84
      %p95 = scmp.eq.s32.totalorder %s23, 0
      %p96 = por %p94, %p95
      %p97 = scmp.ne.s32.totalorder %s83, %s84
      %p98 = scmp.eq.s32.totalorder %s24, 1
      %p99 = por %p97, %p98
      %p101 = scmp.ne.s32.totalorder %s84, %s100
      %p102 = scmp.eq.s32.totalorder %s24, 0
      %p103 = por %p101, %p102
      %s104 = ssub.s32 %s18, %s25
      %p105 = scmp.eq.s32.totalorder %s104, 0
      %s107 = sadd.s32 %s106, 1
      %s108 = scalar_select %p105, %s106, %s107
      %p111 = pneg %p105
      %p112 = scmp.eq.s32.totalorder %s18, 1
      %p113 = por %p111, %p112
      %p114 = scmp.ne.s32.totalorder %s106, %s109
      %p115 = scmp.eq.s32.totalorder %s18, 0
      %p116 = por %p114, %p115
      %p117 = scmp.ne.s32.totalorder %s106, %s109
      %p118 = scmp.eq.s32.totalorder %s23, 1
      %p119 = por %p117, %p118
      %p120 = scmp.ne.s32.totalorder %s109, %s110
      %p121 = scmp.eq.s32.totalorder %s23, 0
      %p122 = por %p120, %p121
      %p123 = scmp.ne.s32.totalorder %s109, %s110
      %p124 = scmp.eq.s32.totalorder %s24, 1
      %p125 = por %p123, %p124
      %p127 = scmp.ne.s32.totalorder %s110, %s126
      %p128 = scmp.eq.s32.totalorder %s24, 0
      %p129 = por %p127, %p128
      %s131 = sadd.s32 %s130, 1
      %p134 = scmp.eq.s32.totalorder %s18, 1
      %p135 = scmp.ne.s32.totalorder %s130, %s132
      %p136 = scmp.eq.s32.totalorder %s18, 0
      %p137 = por %p135, %p136
      %p138 = scmp.ne.s32.totalorder %s130, %s132
      %p139 = scmp.eq.s32.totalorder %s23, 1
      %p140 = por %p138, %p139
      %p141 = scmp.ne.s32.totalorder %s132, %s133
      %p142 = scmp.eq.s32.totalorder %s23, 0
      %p143 = por %p141, %p142
      %p144 = scmp.ne.s32.totalorder %s132, %s133
      %p145 = scmp.eq.s32.totalorder %s24, 1
      %p146 = por %p144, %p145
      %p148 = scmp.ne.s32.totalorder %s133, %s147
      %p149 = scmp.eq.s32.totalorder %s24, 0
      %p150 = por %p148, %p149
      %s152 = sadd.s32 %s151, 1
      %p155 = scmp.eq.s32.totalorder %s18, 1
      %p156 = scmp.ne.s32.totalorder %s151, %s153
      %p157 = scmp.eq.s32.totalorder %s18, 0
      %p158 = por %p156, %p157
      %p159 = scmp.ne.s32.totalorder %s151, %s153
      %p160 = scmp.eq.s32.totalorder %s23, 1
      %p161 = por %p159, %p160
      %p162 = scmp.ne.s32.totalorder %s153, %s154
      %p163 = scmp.eq.s32.totalorder %s23, 0
      %p164 = por %p162, %p163
      %p165 = scmp.ne.s32.totalorder %s153, %s154
      %p166 = scmp.eq.s32.totalorder %s24, 1
      %p167 = por %p165, %p166
      %p169 = scmp.ne.s32.totalorder %s154, %s168
      %p170 = scmp.eq.s32.totalorder %s24, 0
      %p171 = por %p169, %p170
      %s173 = sadd.s32 %s172, 1
      %p176 = scmp.eq.s32.totalorder %s18, 1
      %p177 = scmp.ne.s32.totalorder %s172, %s174
      %p178 = scmp.eq.s32.totalorder %s18, 0
      %p179 = por %p177, %p178
      %p180 = scmp.ne.s32.totalorder %s172, %s174
      %p181 = scmp.eq.s32.totalorder %s23, 1
      %p182 = por %p180, %p181
      %p183 = scmp.ne.s32.totalorder %s174, %s175
      %p184 = scmp.eq.s32.totalorder %s23, 0
      %p185 = por %p183, %p184
      %p186 = scmp.ne.s32.totalorder %s174, %s175
      %p187 = scmp.eq.s32.totalorder %s24, 1
      %p188 = por %p186, %p187
      %p190 = scmp.ne.s32.totalorder %s175, %s189
      %p191 = scmp.eq.s32.totalorder %s24, 0
      %p192 = por %p190, %p191
      %s194 = sadd.s32 %s193, 1
      %p197 = scmp.eq.s32.totalorder %s18, 1
      %p198 = scmp.ne.s32.totalorder %s193, %s195
      %p199 = scmp.eq.s32.totalorder %s18, 0
      %p200 = por %p198, %p199
      %p201 = scmp.ne.s32.totalorder %s193, %s195
      %p202 = scmp.eq.s32.totalorder %s23, 1
      %p203 = por %p201, %p202
      %p204 = scmp.ne.s32.totalorder %s195, %s196
      %p205 = scmp.eq.s32.totalorder %s23, 0
      %p206 = por %p204, %p205
      %p207 = scmp.ne.s32.totalorder %s195, %s196
      %p208 = scmp.eq.s32.totalorder %s24, 1
      %p209 = por %p207, %p208
      %p211 = scmp.ne.s32.totalorder %s196, %s210
      %p212 = scmp.eq.s32.totalorder %s24, 0
      %p213 = por %p211, %p212
      %s215 = sadd.s32 %s214, 1
      %p218 = scmp.eq.s32.totalorder %s18, 1
      %p219 = scmp.ne.s32.totalorder %s214, %s216
      %p220 = scmp.eq.s32.totalorder %s18, 0
      %p221 = por %p219, %p220
      %p222 = scmp.ne.s32.totalorder %s214, %s216
      %p223 = scmp.eq.s32.totalorder %s23, 1
      %p224 = por %p222, %p223
      %p225 = scmp.ne.s32.totalorder %s216, %s217
      %p226 = scmp.eq.s32.totalorder %s23, 0
      %p227 = por %p225, %p226
      %p228 = scmp.ne.s32.totalorder %s216, %s217
      %p229 = scmp.eq.s32.totalorder %s24, 1
      %p230 = por %p228, %p229
      %p232 = scmp.ne.s32.totalorder %s217, %s231
      %p233 = scmp.eq.s32.totalorder %s24, 0
      %p234 = por %p232, %p233
      %s236 = sadd.s32 %s235, 1
      %p239 = scmp.eq.s32.totalorder %s18, 1
      %p240 = scmp.ne.s32.totalorder %s235, %s237
      %p241 = scmp.eq.s32.totalorder %s18, 0
      %p242 = por %p240, %p241
      %p243 = scmp.ne.s32.totalorder %s235, %s237
      %p244 = scmp.eq.s32.totalorder %s23, 1
      %p245 = por %p243, %p244
      %p246 = scmp.ne.s32.totalorder %s237, %s238
      %p247 = scmp.eq.s32.totalorder %s23, 0
      %p248 = por %p246, %p247
      %p249 = scmp.ne.s32.totalorder %s237, %s238
      %p250 = scmp.eq.s32.totalorder %s24, 1
      %p251 = por %p249, %p250
      %p253 = scmp.ne.s32.totalorder %s238, %s252
      %p254 = scmp.eq.s32.totalorder %s24, 0
      %p255 = por %p253, %p254
      %s257 = sadd.s32 %s256, 1
      %p260 = scmp.eq.s32.totalorder %s18, 1
      %p261 = scmp.ne.s32.totalorder %s256, %s258
      %p262 = scmp.eq.s32.totalorder %s18, 0
      %p263 = por %p261, %p262
      %p264 = scmp.ne.s32.totalorder %s256, %s258
      %p265 = scmp.eq.s32.totalorder %s23, 1
      %p266 = por %p264, %p265
      %p267 = scmp.ne.s32.totalorder %s258, %s259
      %p268 = scmp.eq.s32.totalorder %s23, 0
      %p269 = por %p267, %p268
      %p270 = scmp.ne.s32.totalorder %s258, %s259
      %p271 = scmp.eq.s32.totalorder %s24, 1
      %p272 = por %p270, %p271
      %p274 = scmp.ne.s32.totalorder %s259, %s273
      %p275 = scmp.eq.s32.totalorder %s24, 0
      %p276 = por %p274, %p275
      %p277 = scmp.le.s32.totalorder 1, %s18
      %p278 = scmp.lt.s32.totalorder %s18, 3
      %p279 = pnand %p277, %p278
      %p280 = pneg %p279
      // Predicated region
      $region9: #{tpu_custom_call.1} parent=5 // pred_check
        _
      $region10: #{tpu_custom_call.1} parent=5 // pred_check_branch
        %282 = sbr.rel (%p279) target = $region12
      $region11: #{tpu_custom_call.1} parent=5 // pred_region
        %s283 = ssub.s32 %s18, 1
        // Predicated region
        $region13: #{tpu_custom_call.1} parent=11 // pred_check
          %p284 = pneg %p143
        $region14: #{tpu_custom_call.1} parent=11 // pred_check_branch
          %286 = sbr.rel (%p284) target = $region16
        $region15: #{tpu_custom_call.1} parent=11 // pred_region
          _
        $region16: #{tpu_custom_call.1} parent=11 // pred_fallthru
          _
        // Predicated region
        $region17: #{tpu_custom_call.1} parent=11 // pred_check
          %p287 = pneg %p164
        $region18: #{tpu_custom_call.1} parent=11 // pred_check_branch
          %289 = sbr.rel (%p287) target = $region20
        $region19: #{tpu_custom_call.1} parent=11 // pred_region
          _
        $region20: #{tpu_custom_call.1} parent=11 // pred_fallthru
          _
        // Predicated region
        $region21: #{tpu_custom_call.1} parent=11 // pred_check
          %p290 = pneg %p185
        $region22: #{tpu_custom_call.1} parent=11 // pred_check_branch
          %292 = sbr.rel (%p290) target = $region24
        $region23: #{tpu_custom_call.1} parent=11 // pred_region
          _
        $region24: #{tpu_custom_call.1} parent=11 // pred_fallthru
          _
        // Predicated region
        $region25: #{tpu_custom_call.1} parent=11 // pred_check
          %p293 = pneg %p206
        $region26: #{tpu_custom_call.1} parent=11 // pred_check_branch
          %295 = sbr.rel (%p293) target = $region28
        $region27: #{tpu_custom_call.1} parent=11 // pred_region
          _
        $region28: #{tpu_custom_call.1} parent=11 // pred_fallthru
          _
        // Predicated region
        $region29: #{tpu_custom_call.1} parent=11 // pred_check
          %p296 = pneg %p227
        $region30: #{tpu_custom_call.1} parent=11 // pred_check_branch
          %298 = sbr.rel (%p296) target = $region32
        $region31: #{tpu_custom_call.1} parent=11 // pred_region
          _
        $region32: #{tpu_custom_call.1} parent=11 // pred_fallthru
          _
        // Predicated region
        $region33: #{tpu_custom_call.1} parent=11 // pred_check
          %p299 = pneg %p248
        $region34: #{tpu_custom_call.1} parent=11 // pred_check_branch
          %301 = sbr.rel (%p299) target = $region36
        $region35: #{tpu_custom_call.1} parent=11 // pred_region
          _
        $region36: #{tpu_custom_call.1} parent=11 // pred_fallthru
          _
      $region12: #{tpu_custom_call.1} parent=5 // pred_fallthru
        _
      %p302 = scmp.lt.s32.totalorder %s18, 2
      // Predicated region
      $region37: #{tpu_custom_call.1} parent=5 // pred_check
        %p303 = pneg %p302
      $region38: #{tpu_custom_call.1} parent=5 // pred_check_branch
        %305 = sbr.rel (%p303) target = $region40
      $region39: #{tpu_custom_call.1} parent=5 // pred_region
        // Predicated region
        $region41: #{tpu_custom_call.1} parent=39 // pred_check
          %p306 = pneg %p38
        $region42: #{tpu_custom_call.1} parent=39 // pred_check_branch
          %308 = sbr.rel (%p306) target = $region44
        $region43: #{tpu_custom_call.1} parent=39 // pred_region
          %p309 = scmp.lt.s32.totalorder %s18, 1
          %s310 = scalar_select %p309, %s18, 1
          %s311 = smul.addr %s310, 2
          %s312 = scalar_lea.vmem %s0, %s311
        $region44: #{tpu_custom_call.1} parent=39 // pred_fallthru
          _
        // Predicated region
        $region45: #{tpu_custom_call.1} parent=39 // pred_check
          %p313 = pneg %p64
        $region46: #{tpu_custom_call.1} parent=39 // pred_check_branch
          %315 = sbr.rel (%p313) target = $region48
        $region47: #{tpu_custom_call.1} parent=39 // pred_region
          %p316 = scmp.lt.s32.totalorder %s18, 1
          %s317 = scalar_select %p316, %s18, 1
          %s318 = scalar_lea.vmem %s1, %s317
        $region48: #{tpu_custom_call.1} parent=39 // pred_fallthru
          _
        // Predicated region
        $region49: #{tpu_custom_call.1} parent=39 // pred_check
          %p319 = pneg %p90
        $region50: #{tpu_custom_call.1} parent=39 // pred_check_branch
          %321 = sbr.rel (%p319) target = $region52
        $region51: #{tpu_custom_call.1} parent=39 // pred_region
          %p322 = scmp.lt.s32.totalorder %s18, 1
          %s323 = scalar_select %p322, %s18, 1
          %s324 = scalar_lea.vmem %s2, %s323
        $region52: #{tpu_custom_call.1} parent=39 // pred_fallthru
          _
        // Predicated region
        $region53: #{tpu_custom_call.1} parent=39 // pred_check
          %p325 = pneg %p116
        $region54: #{tpu_custom_call.1} parent=39 // pred_check_branch
          %327 = sbr.rel (%p325) target = $region56
        $region55: #{tpu_custom_call.1} parent=39 // pred_region
          %p328 = scmp.lt.s32.totalorder %s18, 1
          %s329 = scalar_select %p328, %s18, 1
          %s330 = scalar_lea.vmem %s3, %s329
        $region56: #{tpu_custom_call.1} parent=39 // pred_fallthru
          _
      $region40: #{tpu_custom_call.1} parent=5 // pred_fallthru
        _
      %p331 = scmp.le.s32.totalorder 1, %s18
      %p332 = scmp.lt.s32.totalorder %s18, 3
      %p333 = pnand %p331, %p332
      %p334 = pneg %p333
      // Predicated region
      $region57: #{tpu_custom_call.1} parent=5 // pred_check
        _
      $region58: #{tpu_custom_call.1} parent=5 // pred_check_branch
        %336 = sbr.rel (%p333) target = $region60
      $region59: #{tpu_custom_call.1} parent=5 // pred_region
        %s337 = ssub.s32 %s18, 1
        %p338 = scmp.lt.s32.totalorder %s23, 1
        %s339 = scalar_select %p338, %s23, 1
        %s340 = smul.addr %s339, 2
        %s341 = scalar_lea.vmem %s0, %s340
        %p342 = pneg %p44
        %p343 = pneg %p41
        %p344 = scmp.lt.s32.totalorder %s23, 1
        %s345 = scalar_select %p344, %s23, 1
        %s346 = scalar_lea.vmem %s1, %s345
        %p347 = pneg %p70
        %p348 = pneg %p67
        %p349 = scmp.lt.s32.totalorder %s23, 1
        %s350 = scalar_select %p349, %s23, 1
        %s351 = scalar_lea.vmem %s2, %s350
        %p352 = pneg %p96
        %p353 = pneg %p93
        %p354 = scmp.lt.s32.totalorder %s23, 1
        %s355 = scalar_select %p354, %s23, 1
        %s356 = scalar_lea.vmem %s3, %s355
        %p357 = pneg %p122
        %p358 = pneg %p119
        %p359 = pneg %p143
        %p360 = pneg %p140
        %p361 = pneg %p164
        %p362 = pneg %p161
        %p363 = pneg %p185
        %p364 = pneg %p182
        %p365 = pneg %p206
        %p366 = pneg %p203
        %p367 = pneg %p227
        %p368 = pneg %p224
        %p369 = pneg %p248
        %p370 = pneg %p245
        %p371 = pneg %p269
        %p372 = pneg %p266
        %p373 = scmp.lt.s32.totalorder %s23, 1
        %s374 = scalar_select %p373, %s23, 1
        %s375 = smul.addr %s374, 2
        %s376 = scalar_lea.vmem %s0, %s375
        %p377 = scmp.lt.s32.totalorder %s23, 1
        %s378 = scalar_select %p377, %s23, 1
        %s379 = scalar_lea.vmem %s1, %s378
        %p380 = scmp.lt.s32.totalorder %s23, 1
        %s381 = scalar_select %p380, %s23, 1
        %s382 = scalar_lea.vmem %s2, %s381
        %p383 = scmp.lt.s32.totalorder %s23, 1
        %s384 = scalar_select %p383, %s23, 1
        %s385 = scalar_lea.vmem %s3, %s384
        %p386 = scmp.eq.s32.totalorder %s23, 0
        // Predicated region
        $region61: #{tpu_custom_call.1} parent=59 // pred_check
          %p387 = pneg %p386
        $region62: #{tpu_custom_call.1} parent=59 // pred_check_branch
          %389 = sbr.rel (%p387) target = $region64
        $region63: #{tpu_custom_call.1} parent=59 // pred_region
          %s390 = scalar_lea.smem [#allocation2], 0
          %391 = sst [smem:[%s390]] 0.0
          %s392 = scalar_lea.smem [#allocation2], 1
          %393 = sst [smem:[%s392]] 0.0
        $region64: #{tpu_custom_call.1} parent=59 // pred_fallthru
          _
        %v394 = vld [vmem:[%s376] sm:$0x3]
        %v395 = vld [vmem:[%s4] sm:$0xff]
        %v396 = vld [vmem:[%s4 + $0x8] sm:$0xff]
        %v397 = vld [vmem:[%s4 + $0x10] sm:$0xff]
        %v398 = vld [vmem:[%s4 + $0x18] sm:$0xff]
        %400 = vset.pattern.permute.xlu0 0
        %401 = vperm.xlu0 %400, %v395
        %v402 = vpop.permute.xlu0 %401
        %405 = vset.pattern.permute.xlu0 0
        %406 = vperm.xlu0 %405, %v396
        %v407 = vpop.permute.xlu0 %406
        %410 = vset.pattern.permute.xlu0 0
        %411 = vperm.xlu0 %410, %v397
        %v412 = vpop.permute.xlu0 %411
        %415 = vset.pattern.permute.xlu0 0
        %416 = vperm.xlu0 %415, %v398
        %v417 = vpop.permute.xlu0 %416
        %v419 = vlaneseq
        %v420 = vshrl.u32 %v419, 7
        %v421 = vsub.s32 0, %v420
        %v422 = vrot.slane %v394, %v421
        %v423 = vmul.f32 %v402, %v422
        %v424 = vmul.f32 %v407, %v422
        %v425 = vmul.f32 %v412, %v422
        %v426 = vmul.f32 %v417, %v422
        %v427 = vld [vmem:[%s5] sm:$0xff]
        %v428 = vld [vmem:[%s5 + $0x8] sm:$0xff]
        %v429 = vld [vmem:[%s5 + $0x10] sm:$0xff]
        %v430 = vld [vmem:[%s5 + $0x18] sm:$0xff]
        %432 = vset.pattern.permute.xlu0 0
        %433 = vperm.xlu0 %432, %v427
        %v434 = vpop.permute.xlu0 %433
        %437 = vset.pattern.permute.xlu0 0
        %438 = vperm.xlu0 %437, %v428
        %v439 = vpop.permute.xlu0 %438
        %442 = vset.pattern.permute.xlu0 0
        %443 = vperm.xlu0 %442, %v429
        %v444 = vpop.permute.xlu0 %443
        %447 = vset.pattern.permute.xlu0 0
        %448 = vperm.xlu0 %447, %v430
        %v449 = vpop.permute.xlu0 %448
        %v451 = vadd.f32 %v423, %v434
        %v452 = vadd.f32 %v424, %v439
        %v453 = vadd.f32 %v425, %v444
        %v454 = vadd.f32 %v426, %v449
        %455 = vset.pattern.permute.xlu0 1
        %456 = vperm.xlu0 %455, %v395
        %v457 = vpop.permute.xlu0 %456
        %459 = vset.pattern.permute.xlu0 1
        %460 = vperm.xlu0 %459, %v396
        %v461 = vpop.permute.xlu0 %460
        %463 = vset.pattern.permute.xlu0 1
        %464 = vperm.xlu0 %463, %v397
        %v465 = vpop.permute.xlu0 %464
        %467 = vset.pattern.permute.xlu0 1
        %468 = vperm.xlu0 %467, %v398
        %v469 = vpop.permute.xlu0 %468
        %v471 = vlaneseq
        %v472 = vshrl.u32 %v471, 7
        %v473 = vsub.s32 1, %v472
        %v474 = vrot.slane %v394, %v473
        %v475 = vmul.f32 %v457, %v474
        %v476 = vmul.f32 %v461, %v474
        %v477 = vmul.f32 %v465, %v474
        %v478 = vmul.f32 %v469, %v474
        %v479 = vadd.f32 %v451, %v475
        %v480 = vadd.f32 %v452, %v476
        %v481 = vadd.f32 %v453, %v477
        %v482 = vadd.f32 %v454, %v478
        %v483 = vtanh.pop %v479
        %v484 = vtanh.pop %v480
        %v485 = vtanh.pop %v481
        %v486 = vtanh.pop %v482
        %v487 = vld [vmem:[%s6] sm:$0xff]
        %v488 = vld [vmem:[%s6 + $0x8] sm:$0xff]
        %v489 = vld [vmem:[%s6 + $0x10] sm:$0xff]
        %v490 = vld [vmem:[%s6 + $0x18] sm:$0xff]
        %v491 = vld [vmem:[%s7] sm:$0xff]
        %v492 = vld [vmem:[%s7 + $0x8] sm:$0xff]
        %v493 = vld [vmem:[%s7 + $0x10] sm:$0xff]
        %v494 = vld [vmem:[%s7 + $0x18] sm:$0xff]
        %496 = vset.pattern.permute.xlu0 0
        %497 = vperm.xlu0 %496, %v491
        %v498 = vpop.permute.xlu0 %497
        %501 = vset.pattern.permute.xlu0 0
        %502 = vperm.xlu0 %501, %v492
        %v503 = vpop.permute.xlu0 %502
        %506 = vset.pattern.permute.xlu0 0
        %507 = vperm.xlu0 %506, %v493
        %v508 = vpop.permute.xlu0 %507
        %511 = vset.pattern.permute.xlu0 0
        %512 = vperm.xlu0 %511, %v494
        %v513 = vpop.permute.xlu0 %512
        %vm515 = vcmask 261120
        %v517 = vsel %vm515, %v487, 0
        %v520 = vsel %vm515, %v488, 0
        %v523 = vsel %vm515, %v489, 0
        %v526 = vsel %vm515, %v490, 0
        %528 = vmatprep.subr.mxu0 0.0
        %529 = vmatpush1.msra.mxu0 0.0
        %530 = vmatprep.subr.mxu0 0.0
        %531 = vmatpush1.msra.mxu0 0.0
        %532 = vmatprep.subr.mxu0 0.0
        %533 = vmatpush1.msra.mxu0 0.0
        %534 = vmatprep.subr.mxu0 0.0
        %535 = vmatpush1.msra.mxu0 0.0
        %536 = vmatprep.subr.mxu0 0.0
        %537 = vmatpush1.msra.mxu0 0.0
        %538 = vmatprep.subr.mxu0 0.0
        %539 = vmatpush1.msra.mxu0 0.0
        %540 = vmatprep.subr.mxu0 0.0
        %541 = vmatpush1.msra.mxu0 0.0
        %542 = vmatprep.subr.mxu0 0.0
        %543 = vmatpush1.msra.mxu0 0.0
        %544 = vmatprep.subr.mxu0 0.0
        %545 = vmatpush1.msra.mxu0 0.0
        %546 = vmatprep.subr.mxu0 0.0
        %547 = vmatpush1.msra.mxu0 0.0
        %548 = vmatprep.subr.mxu0 0.0
        %549 = vmatpush1.msra.mxu0 0.0
        %550 = vmatprep.subr.mxu0 0.0
        %551 = vmatpush1.msra.mxu0 0.0
        %552 = vmatprep.subr.mxu0 0.0
        %553 = vmatpush1.msra.mxu0 %v486
        %554 = vmatprep.subr.mxu0 0.0
        %555 = vmatpush1.msra.mxu0 %v485
        %556 = vmatprep.subr.mxu0 0.0
        %557 = vmatpush1.msra.mxu0 %v484
        %558 = vmatprep.subr.mxu0 0.0
        %559 = vmatpush1.msra.mxu0 %v483
        %560 = vmatprep.subr.mxu0 0.0
        %561 = vmatpush2.msra.mxu0 0.0
        %562 = vmatprep.subr.mxu0 0.0
        %563 = vmatpush2.msra.mxu0 0.0
        %564 = vmatprep.subr.mxu0 0.0
        %565 = vmatpush2.msra.mxu0 0.0
        %566 = vmatprep.subr.mxu0 0.0
        %567 = vmatpush2.msra.mxu0 0.0
        %568 = vmatprep.subr.mxu0 0.0
        %569 = vmatpush2.msra.mxu0 0.0
        %570 = vmatprep.subr.mxu0 0.0
        %571 = vmatpush2.msra.mxu0 0.0
        %572 = vmatprep.subr.mxu0 0.0
        %573 = vmatpush2.msra.mxu0 0.0
        %574 = vmatprep.subr.mxu0 0.0
        %575 = vmatpush2.msra.mxu0 0.0
        %576 = vmatprep.subr.mxu0 0.0
        %577 = vmatpush2.msra.mxu0 0.0
        %578 = vmatprep.subr.mxu0 0.0
        %579 = vmatpush2.msra.mxu0 0.0
        %580 = vmatprep.subr.mxu0 0.0
        %581 = vmatpush2.msra.mxu0 0.0
        %582 = vmatprep.subr.mxu0 0.0
        %583 = vmatpush2.msra.mxu0 0.0
        %584 = vmatprep.subr.mxu0 0.0
        %585 = vmatpush2.msra.mxu0 0.0
        %586 = vmatprep.subr.mxu0 0.0
        %587 = vmatpush2.msra.mxu0 0.0
        %588 = vmatprep.subr.mxu0 0.0
        %589 = vmatpush2.msra.mxu0 0.0
        %590 = vmatprep.subr.mxu0 0.0
        %591 = vmatpush2.msra.mxu0 0.0
        %592 = vmatprep.mubr.f32.mxu0 0.0
        %593 = vmatmul.mubr.f32.gmra.mxu0 %v517
        %v594 = vpop.f32.mrf.mxu0
        %v595 = vadd.f32 %v498, %v594
        %v596 = vpop.f32.mrf.mxu0
        %597 = vmatprep.mubr.f32.mxu0 0.0
        %598 = vmatmul.mubr.f32.gmra.mxu0 %v520
        %v599 = vpop.f32.mrf.mxu0
        %v600 = vadd.f32 %v503, %v599
        %v601 = vpop.f32.mrf.mxu0
        %602 = vmatprep.mubr.f32.mxu0 0.0
        %603 = vmatmul.mubr.f32.gmra.mxu0 %v523
        %v604 = vpop.f32.mrf.mxu0
        %v605 = vadd.f32 %v508, %v604
        %v606 = vpop.f32.mrf.mxu0
        %607 = vmatprep.mubr.f32.mxu0 0.0
        %608 = vmatmul.mubr.f32.gmra.mxu0 %v526
        %v609 = vpop.f32.mrf.mxu0
        %v610 = vadd.f32 %v513, %v609
        %v611 = vpop.f32.mrf.mxu0
        %612 = vdwg.mxu0
        %v613 = vtanh.pop %v595
        %v614 = vtanh.pop %v600
        %v615 = vtanh.pop %v605
        %v616 = vtanh.pop %v610
        %v617 = vld [vmem:[%s8] sm:$0xff]
        %v618 = vld [vmem:[%s8 + $0x8] sm:$0xff]
        %v619 = vld [vmem:[%s8 + $0x10] sm:$0xff]
        %v620 = vld [vmem:[%s8 + $0x18] sm:$0xff]
        %622 = vset.pattern.permute.xlu0 0
        %623 = vperm.xlu0 %622, %v617
        %v624 = vpop.permute.xlu0 %623
        %627 = vset.pattern.permute.xlu0 0
        %628 = vperm.xlu0 %627, %v618
        %v629 = vpop.permute.xlu0 %628
        %632 = vset.pattern.permute.xlu0 0
        %633 = vperm.xlu0 %632, %v619
        %v634 = vpop.permute.xlu0 %633
        %637 = vset.pattern.permute.xlu0 0
        %638 = vperm.xlu0 %637, %v620
        %v639 = vpop.permute.xlu0 %638
        %v641 = vmul.f32 %v613, %v624
        %v642 = vmul.f32 %v614, %v629
        %v643 = vmul.f32 %v615, %v634
        %v644 = vmul.f32 %v616, %v639
        %v645 = vadd.f32 %v641, %v642
        %v646 = vadd.f32 %v645, %v643
        %v647 = vadd.f32 %v646, %v644
        %v648 = vrot.slane %v647, 4
        %v649 = vadd.f32 %v647, %v648
        %v650 = vrot.slane %v649, 2
        %v651 = vadd.f32 %v649, %v650
        %v652 = vrot.slane %v651, 1
        %v653 = vadd.f32 %v651, %v652
        %s654 = sld [smem:[#allocation3]]
        %v655 = vstv %s654
        %v656 = vadd.f32 %v653, %v655
        %v657 = vld [vmem:[%s379] sm:$0x1]
        %v658 = vsub.f32 %v656, %v657
        %s659 = sld [smem:[#allocation2]]
        %v660 = vld [vmem:[%s382] sm:$0x1]
        %v661 = vmul.f32 %v660, %v658
        %v662 = vmul.f32 %v661, %v658
        %vm663 = vcmask 1040384
        %v664 = vsel %vm663, %v662, 0.0
        %665 = vadd.xlane.f32.xlu0 %v664
        %v666 = vpop.xlane.xlu0 %665
        %v667 = vrot.slane %v666, 4
        %v668 = vadd.f32 %v666, %v667
        %v669 = vrot.slane %v668, 2
        %v670 = vadd.f32 %v668, %v669
        %v671 = vrot.slane %v670, 1
        %v672 = vadd.f32 %v670, %v671
        %s673 = vtos %v672
        %s674 = sadd.f32 %s659, %s673
        %s675 = scalar_lea.smem [#allocation2], 0
        %676 = sst [smem:[%s675]] %s674
        %s677 = sld [smem:[#allocation2 + $0x1]]
        %v678 = vld [vmem:[%s385] sm:$0x1]
        %v679 = vmul.f32 %v678, %v656
        %v680 = vmul.f32 %v679, %v656
        %v681 = vsel %vm663, %v680, 0.0
        %682 = vadd.xlane.f32.xlu0 %v681
        %v683 = vpop.xlane.xlu0 %682
        %v684 = vrot.slane %v683, 4
        %v685 = vadd.f32 %v683, %v684
        %v686 = vrot.slane %v685, 2
        %v687 = vadd.f32 %v685, %v686
        %v688 = vrot.slane %v687, 1
        %v689 = vadd.f32 %v687, %v688
        %s690 = vtos %v689
        %s691 = sadd.f32 %s677, %s690
        %s692 = scalar_lea.smem [#allocation2], 1
        %693 = sst [smem:[%s692]] %s691
        %p694 = scmp.eq.s32.totalorder %s23, 1
        // Predicated region
        $region65: #{tpu_custom_call.1} parent=59 // pred_check
          %p695 = pneg %p694
        $region66: #{tpu_custom_call.1} parent=59 // pred_check_branch
          %697 = sbr.rel (%p695) target = $region68
        $region67: #{tpu_custom_call.1} parent=59 // pred_region
          %s698 = sld [smem:[#allocation2]]
          %s699 = sld [smem:[#allocation2 + $0x1]]
          %v700 = vld [vmem:[%s4] sm:$0xff]
          %v701 = vld [vmem:[%s4 + $0x8] sm:$0xff]
          %v702 = vld [vmem:[%s4 + $0x10] sm:$0xff]
          %v703 = vld [vmem:[%s4 + $0x18] sm:$0xff]
          %v704 = vmul.f32 %v700, %v700
          %v705 = vmul.f32 %v701, %v701
          %v706 = vmul.f32 %v702, %v702
          %v707 = vmul.f32 %v703, %v703
          %vm708 = vcmask 15360
          %v709 = vsel %vm708, %v704, 0.0
          %v710 = vsel %vm708, %v705, 0.0
          %v711 = vadd.f32 %v709, %v710
          %v712 = vsel %vm708, %v706, 0.0
          %v713 = vadd.f32 %v711, %v712
          %v714 = vsel %vm708, %v707, 0.0
          %v715 = vadd.f32 %v713, %v714
          %716 = vadd.xlane.f32.xlu0 %v715
          %v717 = vpop.xlane.xlu0 %716
          %v718 = vrot.slane %v717, 4
          %v719 = vadd.f32 %v717, %v718
          %v720 = vrot.slane %v719, 2
          %v721 = vadd.f32 %v719, %v720
          %v722 = vrot.slane %v721, 1
          %v723 = vadd.f32 %v721, %v722
          %s724 = vtos %v723
          %v725 = vstv %s724
          %v726 = vrsqrt.pop %v725
          %v727 = vmul.f32 %v725, %v726
          %vm728 = vcmp.eq.f32.partialorder %v725, inf
          %v729 = vsel %vm728, %v725, %v727
          %vm730 = vcmp.eq.f32.partialorder %v725, 0.0
          %v731 = vand.u32 %v725, 2147483648
          %v732 = vsel %vm730, %v731, %v729
          %s733 = vtos %v732
          %v734 = vld [vmem:[%s6] sm:$0xff]
          %v735 = vld [vmem:[%s6 + $0x8] sm:$0xff]
          %v736 = vld [vmem:[%s6 + $0x10] sm:$0xff]
          %v737 = vld [vmem:[%s6 + $0x18] sm:$0xff]
          %v738 = vmul.f32 %v734, %v734
          %v739 = vmul.f32 %v735, %v735
          %v740 = vmul.f32 %v736, %v736
          %v741 = vmul.f32 %v737, %v737
          %v742 = vsel %vm515, %v738, 0.0
          %v743 = vsel %vm515, %v739, 0.0
          %v744 = vadd.f32 %v742, %v743
          %v745 = vsel %vm515, %v740, 0.0
          %v746 = vadd.f32 %v744, %v745
          %v747 = vsel %vm515, %v741, 0.0
          %v748 = vadd.f32 %v746, %v747
          %749 = vadd.xlane.f32.xlu0 %v748
          %v750 = vpop.xlane.xlu0 %749
          %v751 = vrot.slane %v750, 4
          %v752 = vadd.f32 %v750, %v751
          %v753 = vrot.slane %v752, 2
          %v754 = vadd.f32 %v752, %v753
          %v755 = vrot.slane %v754, 1
          %v756 = vadd.f32 %v754, %v755
          %s757 = vtos %v756
          %v758 = vstv %s757
          %v759 = vrsqrt.pop %v758
          %v760 = vmul.f32 %v758, %v759
          %vm761 = vcmp.eq.f32.partialorder %v758, inf
          %v762 = vsel %vm761, %v758, %v760
          %vm763 = vcmp.eq.f32.partialorder %v758, 0.0
          %v764 = vand.u32 %v758, 2147483648
          %v765 = vsel %vm763, %v764, %v762
          %s766 = vtos %v765
          %s767 = sadd.f32 %s733, %s766
          %v768 = vld [vmem:[%s8] sm:$0xff]
          %v769 = vld [vmem:[%s8 + $0x8] sm:$0xff]
          %v770 = vld [vmem:[%s8 + $0x10] sm:$0xff]
          %v771 = vld [vmem:[%s8 + $0x18] sm:$0xff]
          %v772 = vmul.f32 %v768, %v768
          %v773 = vmul.f32 %v769, %v769
          %v774 = vmul.f32 %v770, %v770
          %v775 = vmul.f32 %v771, %v771
          %vm776 = vcmask 7168
          %v777 = vsel %vm776, %v772, 0.0
          %v778 = vsel %vm776, %v773, 0.0
          %v779 = vadd.f32 %v777, %v778
          %v780 = vsel %vm776, %v774, 0.0
          %v781 = vadd.f32 %v779, %v780
          %v782 = vsel %vm776, %v775, 0.0
          %v783 = vadd.f32 %v781, %v782
          %784 = vadd.xlane.f32.xlu0 %v783
          %v785 = vpop.xlane.xlu0 %784
          %v786 = vrot.slane %v785, 4
          %v787 = vadd.f32 %v785, %v786
          %v788 = vrot.slane %v787, 2
          %v789 = vadd.f32 %v787, %v788
          %v790 = vrot.slane %v789, 1
          %v791 = vadd.f32 %v789, %v790
          %s792 = vtos %v791
          %v793 = vstv %s792
          %v794 = vrsqrt.pop %v793
          %v795 = vmul.f32 %v793, %v794
          %vm796 = vcmp.eq.f32.partialorder %v793, inf
          %v797 = vsel %vm796, %v793, %v795
          %vm798 = vcmp.eq.f32.partialorder %v793, 0.0
          %v799 = vand.u32 %v793, 2147483648
          %v800 = vsel %vm798, %v799, %v797
          %s801 = vtos %v800
          %s802 = sadd.f32 %s767, %s801
          %s803 = sadd.f32 %s698, %s699
          %s804 = smul.f32 %s802, 0.0001
          %s805 = sadd.f32 %s803, %s804
          %v806 = vstv %s805
          %v807 = vlog2.pop %v806
          %v808 = vmul.f32 %v807, 0.6931472
          %s809 = vtos %v808
          %s810 = smul.f32 %s809, 0.4342945
          %s811 = scalar_lea.smem [#allocation4], 0
          %812 = sst [smem:[%s811]] %s810
          %s813 = scalar_lea.smem [#allocation4], 1
          %814 = sst [smem:[%s813]] %s698
          %s815 = scalar_lea.smem [#allocation4], 2
          %816 = sst [smem:[%s815]] %s699
        $region68: #{tpu_custom_call.1} parent=59 // pred_fallthru
          _
        // Predicated region
        $region69: #{tpu_custom_call.1} parent=59 // pred_check
          %p817 = pneg %p266
        $region70: #{tpu_custom_call.1} parent=59 // pred_check_branch
          %819 = sbr.rel (%p817) target = $region72
        $region71: #{tpu_custom_call.1} parent=59 // pred_region
          %s821 = ssub.s32 16, 16
          %822 = vsyncadd [#allocation5], %s821
          %825 = dma.smem_to_hbm [#allocation4], 16, %s10, [#allocation5]
        $region72: #{tpu_custom_call.1} parent=59 // pred_fallthru
          _
        // Predicated region
        $region73: #{tpu_custom_call.1} parent=59 // pred_check
          %p826 = pneg %p266
        $region74: #{tpu_custom_call.1} parent=59 // pred_check_branch
          %828 = sbr.rel (%p826) target = $region76
        $region75: #{tpu_custom_call.1} parent=59 // pred_region
          %829 = dma.done [#allocation5], 16
        $region76: #{tpu_custom_call.1} parent=59 // pred_fallthru
          _
        %830 = sfence
      $region60: #{tpu_custom_call.1} parent=5 // pred_fallthru
        _
      %p831 = scmp.le.s32.totalorder 2, %s18
      // Predicated region
      $region77: #{tpu_custom_call.1} parent=5 // pred_check
        %p832 = pneg %p831
      $region78: #{tpu_custom_call.1} parent=5 // pred_check_branch
        %834 = sbr.rel (%p832) target = $region80
      $region79: #{tpu_custom_call.1} parent=5 // pred_region
        %s835 = ssub.s32 %s18, 2
      $region80: #{tpu_custom_call.1} parent=5 // pred_fallthru
        _
    $region6: #{tpu_custom_call.1} parent=1 // loop_footer
      %s22 = sadd.s32 1, %s18
    $region7: #{tpu_custom_call.1} parent=1 // loop_footer_branch
      %17 = sbr.rel target = $region3
    $region8: #{tpu_custom_call.1} parent=1 // loop_exit
      _
    %836 = vsyncpa [#allocation5], 1
    %s837 = scalar_lea.sflag [#allocation5], 1
    %838 = vsyncpa %s837, 1

</llo_original>
